<compile_context>
chip_gen: v7x
topology: tpu7x:2x2x1
jax: 0.10.0
libtpu: 0.0.40
codegen_flags: <defaults>
</compile_context>

<pallas_src>
import numpy as np
import jax
import jax.numpy as jnp
from jax.experimental import pallas as pl
from jax.experimental.pallas import tpu as pltpu


def istft_kernel(x_ref, w_ref, out_ref):
    # x_ref: (T, 2F)   w_ref: (2F, Wp = R*S)   out_ref: (C, S), C = T-1+R
    T = x_ref.shape[0]
    C, S = out_ref.shape
    R = C - T + 1                                   # == w_ref.shape[1] // S

    # Single fused MXU matmul: frames[t] = full (zero-padded) window
    # contribution of frame t  ==  re_t @ cos - im_t @ sin.
    frames = jnp.dot(x_ref[...], w_ref[...],
                     preferred_element_type=jnp.float32)      # (T, Wp)

    # Overlap-add: window chunk r of frame t lands in output chunk c = t + r.
    # Accumulate directly into the VMEM output block with static shifted
    # slice-adds (no shift matrices, no big register accumulator).
    out_ref[...] = jnp.zeros_like(out_ref)
    for r in range(R):                               # R is small & static
        chunk = frames[:, r * S:(r + 1) * S]         # (T, S) aligned lane slice
        out_ref[r:r + T, :] = out_ref[r:r + T, :] + chunk


def make_istft_weights(fftsize, window_size, stride):
    """Deterministic weight construction, identical to the PyTorch __init__."""
    F = fftsize // 2 + 1
    gain_ifft = 2.0 * stride / window_size
    window_func = gain_ifft * np.hanning(window_size)          # (W,)
    w = np.arange(F)[:, None].astype(np.float64)               # (F, 1)
    t = np.arange(window_size)[None, :].astype(np.float64)     # (1, W)
    alpha = np.where((w == 0) | (w == fftsize // 2), 1.0, 2.0) / fftsize
    coef_cos = alpha * np.cos(2.0 * np.pi * w * t / fftsize) * window_func
    coef_sin = alpha * np.sin(2.0 * np.pi * w * t / fftsize) * window_func
    return coef_cos.astype(np.float32), coef_sin.astype(np.float32)   # (F, W)


def istft_pallas(x, cos_w, sin_w, stride, compute_dtype=jnp.float32):
    """x: (B, T, F, 2) float32.  Returns (B, 1, (T-1)*stride + W) float32.

    compute_dtype: dtype of the MXU operands (keep jnp.float32 for strict
    accuracy; jnp.bfloat16 gives ~2-3x MXU throughput on v6e/v7x with f32
    accumulation preserved).
    """
    B, T, F, two = x.shape
    assert two == 2
    W = cos_w.shape[1]
    S = int(stride)
    R = -(-W // S)                    # ceil(W / S)
    Wp = R * S
    C = T - 1 + R
    L = (T - 1) * S + W

    # Fused + interleaved weight matrix, zero-padded along the window dim:
    # row 2f = cos_f, row 2f+1 = -sin_f  -> single dot computes re@cos - im@sin.
    w_cat = np.zeros((2 * F, Wp), np.float32)
    w_cat[0::2, :W] = cos_w
    w_cat[1::2, :W] = -sin_w
    w_cat = jnp.asarray(w_cat).astype(compute_dtype)

    # (B, T, F, 2) -> (B, T, 2F): contiguous reshape, no strided slicing.
    x_flat = x.reshape(B, T, 2 * F).astype(compute_dtype)

    out_chunks = pl.pallas_call(
        istft_kernel,
        out_shape=jax.ShapeDtypeStruct((B, C, S), jnp.float32),
        grid=(B,),
        in_specs=[
            # batch dim squeezed out of the kernel view
            pl.BlockSpec((None, T, 2 * F), lambda b: (b, 0, 0)),
            # constant index_map -> weights DMA'd once, reused across grid
            pl.BlockSpec((2 * F, Wp), lambda b: (0, 0)),
        ],
        out_specs=pl.BlockSpec((None, C, S), lambda b: (b, 0, 0)),
        compiler_params=pltpu.CompilerParams(
            dimension_semantics=("parallel",)),
    )(x_flat, w_cat)

    # chunks (B, C, S) -> time signal (B, 1, C*S) -> crop to exact length L.
    # (row-major (C, S) -> (C*S,) is a free metadata reshape outside the kernel)
    return out_chunks.reshape(B, 1, C * S)[:, :, :L]


if __name__ == "__main__":
    # small, deterministic configuration; stride=128 keeps the kernel output
    # stores lane-dense (full 128-lane vst).
    fftsize, window_size, stride = 256, 256, 128
    B, T = 2, 8
    F = fftsize // 2 + 1              # 129

    cos_w, sin_w = make_istft_weights(fftsize, window_size, stride)

    key = jax.random.PRNGKey(0)
    x = jax.random.normal(key, (B, T, F, 2), dtype=jnp.float32)

    y = istft_pallas(x, cos_w, sin_w, stride)
    y = jax.block_until_ready(y)

    # numpy reference of ConvTranspose1d(real) - ConvTranspose1d(imag)
    xn = np.asarray(x)
    frames = (np.einsum("btf,fk->btk", xn[..., 0], cos_w)
              - np.einsum("btf,fk->btk", xn[..., 1], sin_w))    # (B, T, W)
    L = (T - 1) * stride + window_size
    ref = np.zeros((B, 1, L), np.float32)
    for t in range(T):
        ref[:, 0, t * stride:t * stride + window_size] += frames[:, t]

    assert y.shape == (B, 1, L), (y.shape, (B, 1, L))
    np.testing.assert_allclose(np.asarray(y), ref, atol=1e-4, rtol=1e-4)
    print("KERNEL_OK")
</pallas_src>

<mosaic_0001>
module attributes {stable_mosaic.version = 11 : i64} {
  func.func @istft_kernel(%arg0: i32, %arg1: memref<1x8x258xf32, #tpu.memory_space<vmem>>, %arg2: memref<258x256xf32, #tpu.memory_space<vmem>>, %arg3: memref<1x9x128xf32, #tpu.memory_space<vmem>>) attributes {dimension_semantics = [#tpu.dimension_semantics<parallel>], iteration_bounds = array<i64: 2>, scalar_prefetch = 0 : i64, scratch_operands = 0 : i64, tpu.core_type = #tpu.core_type<tc>, window_params = [{transform_indices = @transform_0, window_bounds = array<i64: 1, 8, 258>}, {pipeline_mode = #tpu.pipeline_mode<synchronous>, transform_indices = @transform_1, window_bounds = array<i64: 258, 256>}, {transform_indices = @transform_2, window_bounds = array<i64: 1, 9, 128>}]} {
    %c0 = arith.constant 0 : index
    %c0_0 = arith.constant 0 : index
    %c0_1 = arith.constant 0 : index
    %0 = vector.load %arg1[%c0, %c0_0, %c0_1] : memref<1x8x258xf32, #tpu.memory_space<vmem>>, vector<1x8x258xf32>
    %1 = vector.shape_cast %0 : vector<1x8x258xf32> to vector<8x258xf32>
    %c0_2 = arith.constant 0 : index
    %c0_3 = arith.constant 0 : index
    %2 = vector.load %arg2[%c0_2, %c0_3] : memref<258x256xf32, #tpu.memory_space<vmem>>, vector<258x256xf32>
    %cst = arith.constant dense<0.000000e+00> : vector<8x256xf32>
    %3 = tpu.matmul %1, %2, %cst {dimension_numbers = #tpu.dot_dimension_numbers<[1], [0], [0], [1], [0, 0, 1, 1], [], []>} : vector<8x258xf32>, vector<258x256xf32>, vector<8x256xf32> -> vector<8x256xf32>
    %cst_4 = arith.constant 0.000000e+00 : f32
    %4 = vector.broadcast %cst_4 : f32 to vector<9x128xf32>
    %c0_5 = arith.constant 0 : index
    %c0_6 = arith.constant 0 : index
    %c0_7 = arith.constant 0 : index
    %5 = vector.load %arg3[%c0_5, %c0_6, %c0_7] : memref<1x9x128xf32, #tpu.memory_space<vmem>>, vector<1x9x128xf32>
    %6 = vector.shape_cast %5 : vector<1x9x128xf32> to vector<9x128xf32>
    %7 = vector.shape_cast %4 : vector<9x128xf32> to vector<1x9x128xf32>
    tpu.vector_store %arg3[%c0_5, %c0_6, %c0_7], %7 {strides = array<i32>} : memref<1x9x128xf32, #tpu.memory_space<vmem>>, vector<1x9x128xf32>,
    %8 = vector.extract_strided_slice %3 {offsets = [0, 0], sizes = [8, 128], strides = [1, 1]} : vector<8x256xf32> to vector<8x128xf32>
    %c0_8 = arith.constant 0 : index
    %c0_9 = arith.constant 0 : index
    %c0_10 = arith.constant 0 : index
    %9 = vector.load %arg3[%c0_8, %c0_9, %c0_10] : memref<1x9x128xf32, #tpu.memory_space<vmem>>, vector<1x8x128xf32>
    %10 = vector.shape_cast %9 : vector<1x8x128xf32> to vector<8x128xf32>
    %11 = arith.addf %10, %8 : vector<8x128xf32>
    %c0_11 = arith.constant 0 : index
    %c0_12 = arith.constant 0 : index
    %c0_13 = arith.constant 0 : index
    %12 = vector.load %arg3[%c0_11, %c0_12, %c0_13] : memref<1x9x128xf32, #tpu.memory_space<vmem>>, vector<1x8x128xf32>
    %13 = vector.shape_cast %12 : vector<1x8x128xf32> to vector<8x128xf32>
    %14 = vector.shape_cast %11 : vector<8x128xf32> to vector<1x8x128xf32>
    tpu.vector_store %arg3[%c0_11, %c0_12, %c0_13], %14 {strides = array<i32>} : memref<1x9x128xf32, #tpu.memory_space<vmem>>, vector<1x8x128xf32>,
    %15 = vector.extract_strided_slice %3 {offsets = [0, 128], sizes = [8, 128], strides = [1, 1]} : vector<8x256xf32> to vector<8x128xf32>
    %c0_14 = arith.constant 0 : index
    %c1 = arith.constant 1 : index
    %c0_15 = arith.constant 0 : index
    %16 = vector.load %arg3[%c0_14, %c1, %c0_15] : memref<1x9x128xf32, #tpu.memory_space<vmem>>, vector<1x8x128xf32>
    %17 = vector.shape_cast %16 : vector<1x8x128xf32> to vector<8x128xf32>
    %18 = arith.addf %17, %15 : vector<8x128xf32>
    %c0_16 = arith.constant 0 : index
    %c1_17 = arith.constant 1 : index
    %c0_18 = arith.constant 0 : index
    %19 = vector.load %arg3[%c0_16, %c1_17, %c0_18] : memref<1x9x128xf32, #tpu.memory_space<vmem>>, vector<1x8x128xf32>
    %20 = vector.shape_cast %19 : vector<1x8x128xf32> to vector<8x128xf32>
    %21 = vector.shape_cast %18 : vector<8x128xf32> to vector<1x8x128xf32>
    tpu.vector_store %arg3[%c0_16, %c1_17, %c0_18], %21 {strides = array<i32>} : memref<1x9x128xf32, #tpu.memory_space<vmem>>, vector<1x8x128xf32>,
    return
  }
  func.func @transform_0(%arg0: i32) -> (i32, i32, i32) {
    %c0_i32 = arith.constant 0 : i32
    %c0_i32_0 = arith.constant 0 : i32
    %c0_i32_1 = arith.constant 0 : i32
    return %arg0, %c0_i32, %c0_i32_0 : i32, i32, i32
  }
  func.func @transform_1(%arg0: i32) -> (i32, i32) {
    %c0_i32 = arith.constant 0 : i32
    %c0_i32_0 = arith.constant 0 : i32
    %c0_i32_1 = arith.constant 0 : i32
    return %c0_i32, %c0_i32_0 : i32, i32
  }
  func.func @transform_2(%arg0: i32) -> (i32, i32, i32) {
    %c0_i32 = arith.constant 0 : i32
    %c0_i32_0 = arith.constant 0 : i32
    %c0_i32_1 = arith.constant 0 : i32
    return %arg0, %c0_i32, %c0_i32_0 : i32, i32, i32
  }
}

</mosaic_0001>

<llo_original>
// kernel: tpu_custom_call.1
$region0: #{tpu_custom_call.1}
  #allocation0 [shape = 'u32[]', space=smem, size = 0x4, offset = 0x4, fixed_abs, tag = 'smem constant byte address 0x4 - core index']
  #allocation1 [shape = 'u32[144,128]{1,0:T(1,128)}', space=vmem, size = 0x12000, scoped, tag = 'internal scratch']
  %s0 = inlined_call_operand.hbm [shape: f32[2,8,258], index: 0, kind: input, shape index: {}]
  %s1 = inlined_call_operand.hbm [shape: f32[258,256], index: 1, kind: input, shape index: {}]
  %s2 = inlined_call_operand.vmem [shape: f32[2,9,128], index: 2, kind: output, shape index: {}]
  %s3 = sld [smem:[#allocation0]]
  $region49: #{tpu_custom_call.1} parent=0
    _
  %s5 = ssub.s32 1, %s3
  %s6 = scalar_select 0, %s5, %s3
  $region1: #{tpu_custom_call.1} parent=0
    #allocation2 [shape = 'u8[24576]{0}', space=vmem, size = 0x6000, scoped, tag = 'input window, operand 0']
    #allocation3 [shape = 's32[2]{0}', space=sflag, size = 0x8, scoped, tag = 'scoped memory for tpu_custom_call.1']
    #allocation4 [shape = 'u8[270336]{0}', space=vmem, size = 0x42000, scoped, tag = 'input window, operand 1, single buffered']
    #allocation5 [shape = 's32[1]{0}', space=sflag, size = 0x4, scoped, tag = 'scoped memory for tpu_custom_call.1']
    %7 = vsyncpa [#allocation3], 0
    %s8 = scalar_lea.sflag [#allocation3], 1
    %9 = vsyncpa %s8, 0
    %10 = vsyncpa [#allocation5], 0
    loop: start=0, step=1, limit=4
    $region2: #{tpu_custom_call.1} parent=1 // loop_pre_header
      _
    $region3: #{tpu_custom_call.1} parent=1 // loop_header
      %s12 = sphi 0, %s16
      %p13 = scmp.ge.s32.totalorder %s12, 4
      %s22 = sphi 0, %s24
      %s25 = sphi 0, %s22
      %s26 = sphi 0, %s25
      %s42 = sphi 0, %s26
      %s46 = sphi 0, %s46
      %s48 = sphi 0, %s46
      %s49 = sphi 0, %s48
      %s63 = sphi 0, %s49
      %s69 = sphi 0, %s71
      %s72 = sphi 0, %s69
      %s73 = sphi 0, %s72
      %s89 = sphi 0, %s73
    $region4: #{tpu_custom_call.1} parent=1 // loop_header_branch
      %15 = sbr.rel (%p13) target = $region8
    $region5: #{tpu_custom_call.1} parent=1 // loop_body
      %s17 = ssub.s32 %s12, 1
      %s18 = ssub.s32 %s12, 2
      %s19 = sadd.s32 %s12, 1
      %s20 = ssub.s32 %s12, %s19
      %p21 = scmp.eq.s32.totalorder %s20, 0
      %s23 = sadd.s32 %s22, 1
      %s24 = scalar_select %p21, %s22, %s23
      %p27 = pneg %p21
      %p28 = scmp.eq.s32.totalorder %s12, 1
      %p29 = por %p27, %p28
      %p30 = scmp.ne.s32.totalorder %s22, %s25
      %p31 = scmp.eq.s32.totalorder %s12, 0
      %p32 = por %p30, %p31
      %p33 = scmp.ne.s32.totalorder %s22, %s25
      %p34 = scmp.eq.s32.totalorder %s17, 1
      %p35 = por %p33, %p34
      %p36 = scmp.ne.s32.totalorder %s25, %s26
      %p37 = scmp.eq.s32.totalorder %s17, 0
      %p38 = por %p36, %p37
      %p39 = scmp.ne.s32.totalorder %s25, %s26
      %p40 = scmp.eq.s32.totalorder %s18, 1
      %p41 = por %p39, %p40
      %p43 = scmp.ne.s32.totalorder %s26, %s42
      %p44 = scmp.eq.s32.totalorder %s18, 0
      %p45 = por %p43, %p44
      %s47 = sadd.s32 %s46, 1
      %p50 = scmp.eq.s32.totalorder %s12, 1
      %p51 = scmp.ne.s32.totalorder %s46, %s48
      %p52 = scmp.eq.s32.totalorder %s12, 0
      %p53 = por %p51, %p52
      %p54 = scmp.ne.s32.totalorder %s46, %s48
      %p55 = scmp.eq.s32.totalorder %s17, 1
      %p56 = por %p54, %p55
      %p57 = scmp.ne.s32.totalorder %s48, %s49
      %p58 = scmp.eq.s32.totalorder %s17, 0
      %p59 = por %p57, %p58
      %p60 = scmp.ne.s32.totalorder %s48, %s49
      %p61 = scmp.eq.s32.totalorder %s18, 1
      %p62 = por %p60, %p61
      %p64 = scmp.ne.s32.totalorder %s49, %s63
      %p65 = scmp.eq.s32.totalorder %s18, 0
      %p66 = por %p64, %p65
      %s67 = ssub.s32 %s12, %s19
      %p68 = scmp.eq.s32.totalorder %s67, 0
      %s70 = sadd.s32 %s69, 1
      %s71 = scalar_select %p68, %s69, %s70
      %p74 = pneg %p68
      %p75 = scmp.eq.s32.totalorder %s12, 1
      %p76 = por %p74, %p75
      %p77 = scmp.ne.s32.totalorder %s69, %s72
      %p78 = scmp.eq.s32.totalorder %s12, 0
      %p79 = por %p77, %p78
      %p80 = scmp.ne.s32.totalorder %s69, %s72
      %p81 = scmp.eq.s32.totalorder %s17, 1
      %p82 = por %p80, %p81
      %p83 = scmp.ne.s32.totalorder %s72, %s73
      %p84 = scmp.eq.s32.totalorder %s17, 0
      %p85 = por %p83, %p84
      %p86 = scmp.ne.s32.totalorder %s72, %s73
      %p87 = scmp.eq.s32.totalorder %s18, 1
      %p88 = por %p86, %p87
      %p90 = scmp.ne.s32.totalorder %s73, %s89
      %p91 = scmp.eq.s32.totalorder %s18, 0
      %p92 = por %p90, %p91
      %p93 = scmp.le.s32.totalorder 1, %s12
      %p94 = scmp.lt.s32.totalorder %s12, 3
      %p95 = pnand %p93, %p94
      %p96 = pneg %p95
      // Predicated region
      $region9: #{tpu_custom_call.1} parent=5 // pred_check
        _
      $region10: #{tpu_custom_call.1} parent=5 // pred_check_branch
        %98 = sbr.rel (%p95) target = $region12
      $region11: #{tpu_custom_call.1} parent=5 // pred_region
        %s99 = ssub.s32 %s12, 1
        // Predicated region
        $region13: #{tpu_custom_call.1} parent=11 // pred_check
          %p100 = pneg %p59
        $region14: #{tpu_custom_call.1} parent=11 // pred_check_branch
          %102 = sbr.rel (%p100) target = $region16
        $region15: #{tpu_custom_call.1} parent=11 // pred_region
          %s104 = ssub.s32 8448, 8448
          %105 = vsyncadd [#allocation5], %s104
          %s106 = sshll.u32 [#allocation4], 4
          %s107 = int_to_ptr.vmem [resolvable:$true] %s106
          %112 = dma.hbm_to_vmem [thread:$0]  %s1, 8448, %s107, [#allocation5], 256, 256, 16
        $region16: #{tpu_custom_call.1} parent=11 // pred_fallthru
          _
      $region12: #{tpu_custom_call.1} parent=5 // pred_fallthru
        _
      %p113 = scmp.lt.s32.totalorder %s12, 2
      // Predicated region
      $region17: #{tpu_custom_call.1} parent=5 // pred_check
        %p114 = pneg %p113
      $region18: #{tpu_custom_call.1} parent=5 // pred_check_branch
        %116 = sbr.rel (%p114) target = $region20
      $region19: #{tpu_custom_call.1} parent=5 // pred_region
        // Predicated region
        $region21: #{tpu_custom_call.1} parent=19 // pred_check
          %p117 = pneg %p32
        $region22: #{tpu_custom_call.1} parent=19 // pred_check_branch
          %119 = sbr.rel (%p117) target = $region24
        $region23: #{tpu_custom_call.1} parent=19 // pred_region
          %s120 = sand.u32 %s22, 1
          %s121 = scalar_lea.sflag [#allocation3], %s120
          %s122 = sand.u32 %s22, 1
          %s123 = smul.addr %s122, 24
          %s124 = scalar_lea.vmem [#allocation2], %s123
          %s126 = ssub.s32 384, 384
          %127 = vsyncadd %s121, %s126
          %s128 = smul.addr %s12, 3
          %s129 = smul.addr %s128, 128
          %s130 = scalar_lea.hbm %s0, %s129
          %s132 = sshll.u32 %s124, 4
          %s133 = int_to_ptr.vmem [resolvable:$true] %s132
          %135 = dma.hbm_to_vmem [thread:$0]  %s130, 384, %s133, %s121
        $region24: #{tpu_custom_call.1} parent=19 // pred_fallthru
          _
      $region20: #{tpu_custom_call.1} parent=5 // pred_fallthru
        _
      %p136 = scmp.le.s32.totalorder 1, %s12
      %p137 = scmp.lt.s32.totalorder %s12, 3
      %p138 = pnand %p136, %p137
      %p139 = pneg %p138
      // Predicated region
      $region25: #{tpu_custom_call.1} parent=5 // pred_check
        _
      $region26: #{tpu_custom_call.1} parent=5 // pred_check_branch
        %141 = sbr.rel (%p138) target = $region28
      $region27: #{tpu_custom_call.1} parent=5 // pred_region
        %s142 = ssub.s32 %s12, 1
        %s143 = sand.u32 %s25, 1
        %s144 = scalar_lea.sflag [#allocation3], %s143
        %s145 = sand.u32 %s25, 1
        %s146 = smul.addr %s145, 24
        %s147 = scalar_lea.vmem [#allocation2], %s146
        // Predicated region
        $region29: #{tpu_custom_call.1} parent=27 // pred_check
          %p148 = pneg %p38
        $region30: #{tpu_custom_call.1} parent=27 // pred_check_branch
          %150 = sbr.rel (%p148) target = $region32
        $region31: #{tpu_custom_call.1} parent=27 // pred_region
          %151 = dma.done %s144, 384
        $region32: #{tpu_custom_call.1} parent=27 // pred_fallthru
          _
        // Predicated region
        $region33: #{tpu_custom_call.1} parent=27 // pred_check
          %p152 = pneg %p59
        $region34: #{tpu_custom_call.1} parent=27 // pred_check_branch
          %154 = sbr.rel (%p152) target = $region36
        $region35: #{tpu_custom_call.1} parent=27 // pred_region
          %155 = dma.done [#allocation5], 8448
        $region36: #{tpu_custom_call.1} parent=27 // pred_fallthru
          _
        %s156 = sand.u32 %s25, 1
        %s157 = scalar_lea.sflag [#allocation3], %s156
        %s158 = sand.u32 %s25, 1
        %s159 = smul.addr %s158, 24
        %s160 = scalar_lea.vmem [#allocation2], %s159
        %p161 = pneg %p38
        %p162 = pneg %p35
        %p163 = pneg %p59
        %p164 = pneg %p56
        %p165 = pneg %p85
        %p166 = pneg %p82
        %p167 = scmp.lt.s32.totalorder %s17, 1
        %s168 = scalar_select %p167, %s17, 1
        %s169 = smul.addr %s168, 2
        %s170 = smul.addr %s169, 8
        %s171 = scalar_lea.vmem %s2, %s170
        %p172 = scmp.lt.s32.totalorder %s17, 1
        %s173 = scalar_select %p172, %s17, 1
        %s174 = smul.addr %s173, 2
        %s175 = smul.addr %s174, 8
        %s176 = scalar_lea.vmem %s2, %s175
        %v177 = vld [vmem:[%s147] sm:$0xff]
        %v178 = vld [vmem:[%s147 + $0x8] sm:$0xff]
        %v179 = vld [vmem:[%s147 + $0x10] sm:$0xff]
        %v180 = vld [vmem:[#allocation4] sm:$0xff]
        %v181 = vld [vmem:[#allocation4 + $0x8] sm:$0xff]
        %v182 = vld [vmem:[#allocation4 + $0x10] sm:$0xff]
        %v183 = vld [vmem:[#allocation4 + $0x18] sm:$0xff]
        %v184 = vld [vmem:[#allocation4 + $0x20] sm:$0xff]
        %v185 = vld [vmem:[#allocation4 + $0x28] sm:$0xff]
        %v186 = vld [vmem:[#allocation4 + $0x30] sm:$0xff]
        %v187 = vld [vmem:[#allocation4 + $0x38] sm:$0xff]
        %v188 = vld [vmem:[#allocation4 + $0x40] sm:$0xff]
        %v189 = vld [vmem:[#allocation4 + $0x48] sm:$0xff]
        %v190 = vld [vmem:[#allocation4 + $0x50] sm:$0xff]
        %v191 = vld [vmem:[#allocation4 + $0x58] sm:$0xff]
        %v192 = vld [vmem:[#allocation4 + $0x60] sm:$0xff]
        %v193 = vld [vmem:[#allocation4 + $0x68] sm:$0xff]
        %v194 = vld [vmem:[#allocation4 + $0x70] sm:$0xff]
        %v195 = vld [vmem:[#allocation4 + $0x78] sm:$0xff]
        %v196 = vld [vmem:[#allocation4 + $0x80] sm:$0xff]
        %v197 = vld [vmem:[#allocation4 + $0x88] sm:$0xff]
        %v198 = vld [vmem:[#allocation4 + $0x90] sm:$0xff]
        %v199 = vld [vmem:[#allocation4 + $0x98] sm:$0xff]
        %v200 = vld [vmem:[#allocation4 + $0xa0] sm:$0xff]
        %v201 = vld [vmem:[#allocation4 + $0xa8] sm:$0xff]
        %v202 = vld [vmem:[#allocation4 + $0xb0] sm:$0xff]
        %v203 = vld [vmem:[#allocation4 + $0xb8] sm:$0xff]
        %v204 = vld [vmem:[#allocation4 + $0xc0] sm:$0xff]
        %v205 = vld [vmem:[#allocation4 + $0xc8] sm:$0xff]
        %v206 = vld [vmem:[#allocation4 + $0xd0] sm:$0xff]
        %v207 = vld [vmem:[#allocation4 + $0xd8] sm:$0xff]
        %v208 = vld [vmem:[#allocation4 + $0xe0] sm:$0xff]
        %v209 = vld [vmem:[#allocation4 + $0xe8] sm:$0xff]
        %v210 = vld [vmem:[#allocation4 + $0xf0] sm:$0xff]
        %v211 = vld [vmem:[#allocation4 + $0xf8] sm:$0xff]
        %v212 = vld [vmem:[#allocation4 + $0x100] sm:$0xff]
        %v213 = vld [vmem:[#allocation4 + $0x108] sm:$0xff]
        %v214 = vld [vmem:[#allocation4 + $0x110] sm:$0xff]
        %v215 = vld [vmem:[#allocation4 + $0x118] sm:$0xff]
        %v216 = vld [vmem:[#allocation4 + $0x120] sm:$0xff]
        %v217 = vld [vmem:[#allocation4 + $0x128] sm:$0xff]
        %v218 = vld [vmem:[#allocation4 + $0x130] sm:$0xff]
        %v219 = vld [vmem:[#allocation4 + $0x138] sm:$0xff]
        %v220 = vld [vmem:[#allocation4 + $0x140] sm:$0xff]
        %v221 = vld [vmem:[#allocation4 + $0x148] sm:$0xff]
        %v222 = vld [vmem:[#allocation4 + $0x150] sm:$0xff]
        %v223 = vld [vmem:[#allocation4 + $0x158] sm:$0xff]
        %v224 = vld [vmem:[#allocation4 + $0x160] sm:$0xff]
        %v225 = vld [vmem:[#allocation4 + $0x168] sm:$0xff]
        %v226 = vld [vmem:[#allocation4 + $0x170] sm:$0xff]
        %v227 = vld [vmem:[#allocation4 + $0x178] sm:$0xff]
        %v228 = vld [vmem:[#allocation4 + $0x180] sm:$0xff]
        %v229 = vld [vmem:[#allocation4 + $0x188] sm:$0xff]
        %v230 = vld [vmem:[#allocation4 + $0x190] sm:$0xff]
        %v231 = vld [vmem:[#allocation4 + $0x198] sm:$0xff]
        %v232 = vld [vmem:[#allocation4 + $0x1a0] sm:$0xff]
        %v233 = vld [vmem:[#allocation4 + $0x1a8] sm:$0xff]
        %v234 = vld [vmem:[#allocation4 + $0x1b0] sm:$0xff]
        %v235 = vld [vmem:[#allocation4 + $0x1b8] sm:$0xff]
        %v236 = vld [vmem:[#allocation4 + $0x1c0] sm:$0xff]
        %v237 = vld [vmem:[#allocation4 + $0x1c8] sm:$0xff]
        %v238 = vld [vmem:[#allocation4 + $0x1d0] sm:$0xff]
        %v239 = vld [vmem:[#allocation4 + $0x1d8] sm:$0xff]
        %v240 = vld [vmem:[#allocation4 + $0x1e0] sm:$0xff]
        %v241 = vld [vmem:[#allocation4 + $0x1e8] sm:$0xff]
        %v242 = vld [vmem:[#allocation4 + $0x1f0] sm:$0xff]
        %v243 = vld [vmem:[#allocation4 + $0x1f8] sm:$0xff]
        %v244 = vld [vmem:[#allocation4 + $0x200] sm:$0x3]
        %v245 = vld [vmem:[#allocation4 + $0x208] sm:$0x3]
        %vm246 = vcmask 15360
        %v248 = vsel %vm246, %v179, 0
        %vm250 = vcmask 1041408
        %v252 = vsel %vm250, %v244, 0
        %v255 = vsel %vm250, %v245, 0
        %257 = vmatprep.subr.mxu0 %v181
        %258 = vmatpush1.msra.mxu0 %v180
        %259 = vmatprep.subr.mxu0 %v183
        %260 = vmatpush1.msra.mxu0 %v182
        %261 = vmatprep.subr.mxu0 %v185
        %262 = vmatpush1.msra.mxu0 %v184
        %263 = vmatprep.subr.mxu0 %v187
        %264 = vmatpush1.msra.mxu0 %v186
        %265 = vmatprep.subr.mxu0 %v189
        %266 = vmatpush1.msra.mxu0 %v188
        %267 = vmatprep.subr.mxu0 %v191
        %268 = vmatpush1.msra.mxu0 %v190
        %269 = vmatprep.subr.mxu0 %v193
        %270 = vmatpush1.msra.mxu0 %v192
        %271 = vmatprep.subr.mxu0 %v195
        %272 = vmatpush1.msra.mxu0 %v194
        %273 = vmatprep.subr.mxu0 %v197
        %274 = vmatpush1.msra.mxu0 %v196
        %275 = vmatprep.subr.mxu0 %v199
        %276 = vmatpush1.msra.mxu0 %v198
        %277 = vmatprep.subr.mxu0 %v201
        %278 = vmatpush1.msra.mxu0 %v200
        %279 = vmatprep.subr.mxu0 %v203
        %280 = vmatpush1.msra.mxu0 %v202
        %281 = vmatprep.subr.mxu0 %v205
        %282 = vmatpush1.msra.mxu0 %v204
        %283 = vmatprep.subr.mxu0 %v207
        %284 = vmatpush1.msra.mxu0 %v206
        %285 = vmatprep.subr.mxu0 %v209
        %286 = vmatpush1.msra.mxu0 %v208
        %287 = vmatprep.subr.mxu0 %v211
        %288 = vmatpush1.msra.mxu0 %v210
        %289 = vmatprep.subr.mxu0 %v213
        %290 = vmatpush1.msra.mxu0 %v212
        %291 = vmatprep.subr.mxu0 %v215
        %292 = vmatpush1.msra.mxu0 %v214
        %293 = vmatprep.subr.mxu0 %v217
        %294 = vmatpush1.msra.mxu0 %v216
        %295 = vmatprep.subr.mxu0 %v219
        %296 = vmatpush1.msra.mxu0 %v218
        %297 = vmatprep.subr.mxu0 %v221
        %298 = vmatpush1.msra.mxu0 %v220
        %299 = vmatprep.subr.mxu0 %v223
        %300 = vmatpush1.msra.mxu0 %v222
        %301 = vmatprep.subr.mxu0 %v225
        %302 = vmatpush1.msra.mxu0 %v224
        %303 = vmatprep.subr.mxu0 %v227
        %304 = vmatpush1.msra.mxu0 %v226
        %305 = vmatprep.subr.mxu0 %v229
        %306 = vmatpush1.msra.mxu0 %v228
        %307 = vmatprep.subr.mxu0 %v231
        %308 = vmatpush1.msra.mxu0 %v230
        %309 = vmatprep.subr.mxu0 %v233
        %310 = vmatpush1.msra.mxu0 %v232
        %311 = vmatprep.subr.mxu0 %v235
        %312 = vmatpush1.msra.mxu0 %v234
        %313 = vmatprep.subr.mxu0 %v237
        %314 = vmatpush1.msra.mxu0 %v236
        %315 = vmatprep.subr.mxu0 %v239
        %316 = vmatpush1.msra.mxu0 %v238
        %317 = vmatprep.subr.mxu0 %v241
        %318 = vmatpush1.msra.mxu0 %v240
        %319 = vmatprep.subr.mxu0 %v243
        %320 = vmatpush1.msra.mxu0 %v242
        %321 = vmatprep.mubr.f32.mxu0 %v178
        %322 = vmatmul.mubr.f32.gmra.mrb[0].mxu0 %v177
        %v323 = vpop.f32.mrb[0].mxu0
        %v324 = vadd.f32 0.0, %v323
        %v325 = vpop.f32.mrb[0].mxu0
        %v326 = vadd.f32 0.0, %v325
        %327 = vdwg.mxu0
        %328 = vmatprep.subr.mxu0 %v255
        %329 = vmatpush1.msra.mxu0 %v252
        %330 = vmatprep.subr.mxu0 0.0
        %331 = vmatpush1.msra.mxu0 0.0
        %332 = vmatprep.subr.mxu0 0.0
        %333 = vmatpush1.msra.mxu0 0.0
        %334 = vmatprep.subr.mxu0 0.0
        %335 = vmatpush1.msra.mxu0 0.0
        %336 = vmatprep.subr.mxu0 0.0
        %337 = vmatpush1.msra.mxu0 0.0
        %338 = vmatprep.subr.mxu0 0.0
        %339 = vmatpush1.msra.mxu0 0.0
        %340 = vmatprep.subr.mxu0 0.0
        %341 = vmatpush1.msra.mxu0 0.0
        %342 = vmatprep.subr.mxu0 0.0
        %343 = vmatpush1.msra.mxu0 0.0
        %344 = vmatprep.subr.mxu0 0.0
        %345 = vmatpush1.msra.mxu0 0.0
        %346 = vmatprep.subr.mxu0 0.0
        %347 = vmatpush1.msra.mxu0 0.0
        %348 = vmatprep.subr.mxu0 0.0
        %349 = vmatpush1.msra.mxu0 0.0
        %350 = vmatprep.subr.mxu0 0.0
        %351 = vmatpush1.msra.mxu0 0.0
        %352 = vmatprep.subr.mxu0 0.0
        %353 = vmatpush1.msra.mxu0 0.0
        %354 = vmatprep.subr.mxu0 0.0
        %355 = vmatpush1.msra.mxu0 0.0
        %356 = vmatprep.subr.mxu0 0.0
        %357 = vmatpush1.msra.mxu0 0.0
        %358 = vmatprep.subr.mxu0 0.0
        %359 = vmatpush1.msra.mxu0 0.0
        %360 = vmatprep.subr.mxu0 0.0
        %361 = vmatpush1.msra.mxu0 0.0
        %362 = vmatprep.subr.mxu0 0.0
        %363 = vmatpush1.msra.mxu0 0.0
        %364 = vmatprep.subr.mxu0 0.0
        %365 = vmatpush1.msra.mxu0 0.0
        %366 = vmatprep.subr.mxu0 0.0
        %367 = vmatpush1.msra.mxu0 0.0
        %368 = vmatprep.subr.mxu0 0.0
        %369 = vmatpush1.msra.mxu0 0.0
        %370 = vmatprep.subr.mxu0 0.0
        %371 = vmatpush1.msra.mxu0 0.0
        %372 = vmatprep.subr.mxu0 0.0
        %373 = vmatpush1.msra.mxu0 0.0
        %374 = vmatprep.subr.mxu0 0.0
        %375 = vmatpush1.msra.mxu0 0.0
        %376 = vmatprep.subr.mxu0 0.0
        %377 = vmatpush1.msra.mxu0 0.0
        %378 = vmatprep.subr.mxu0 0.0
        %379 = vmatpush1.msra.mxu0 0.0
        %380 = vmatprep.subr.mxu0 0.0
        %381 = vmatpush1.msra.mxu0 0.0
        %382 = vmatprep.subr.mxu0 0.0
        %383 = vmatpush1.msra.mxu0 0.0
        %384 = vmatprep.subr.mxu0 0.0
        %385 = vmatpush1.msra.mxu0 0.0
        %386 = vmatprep.subr.mxu0 0.0
        %387 = vmatpush1.msra.mxu0 0.0
        %388 = vmatprep.subr.mxu0 0.0
        %389 = vmatpush1.msra.mxu0 0.0
        %390 = vmatprep.subr.mxu0 0.0
        %391 = vmatpush1.msra.mxu0 0.0
        %392 = vmatprep.mubr.f32.mxu0 0.0
        %393 = vmatmul.mubr.f32.gmra.mrb[0].mxu0 %v248
        %v394 = vpop.f32.mrb[0].mxu0
        %v395 = vadd.f32 %v324, %v394
        %v396 = vpop.f32.mrb[0].mxu0
        %v397 = vadd.f32 %v326, %v396
        %398 = vdwg.mxu0
        %399 = vst [vmem:[%s176] sm:$0xff] 0.0
        %400 = vst [vmem:[%s176 + $0x8] sm:$0x1] 0.0
        %v401 = vld [vmem:[%s176] sm:$0xff]
        %v402 = vadd.f32 %v401, %v395
        %403 = vst [vmem:[%s176] sm:$0xff] %v402
        %v404 = vld [vmem:[%s176 + $0x1] sm:$0xff]
        %v405 = vadd.f32 %v404, %v397
        %406 = vst [vmem:[%s176 + $0x1] sm:$0xff] %v405
        %p407 = scmp.lt.s32.totalorder %s17, 1
        %s408 = scalar_select %p407, %s17, 1
        %s409 = smul.addr %s408, 2
        %s410 = smul.addr %s409, 8
        %s411 = scalar_lea.vmem %s2, %s410
        // Predicated region
        $region37: #{tpu_custom_call.1} parent=27 // pred_check
          %p412 = pneg %p82
        $region38: #{tpu_custom_call.1} parent=27 // pred_check_branch
          %414 = sbr.rel (%p412) target = $region40
        $region39: #{tpu_custom_call.1} parent=27 // pred_region
          _
        $region40: #{tpu_custom_call.1} parent=27 // pred_fallthru
          _
      $region28: #{tpu_custom_call.1} parent=5 // pred_fallthru
        _
      %p415 = scmp.le.s32.totalorder 2, %s12
      // Predicated region
      $region41: #{tpu_custom_call.1} parent=5 // pred_check
        %p416 = pneg %p415
      $region42: #{tpu_custom_call.1} parent=5 // pred_check_branch
        %418 = sbr.rel (%p416) target = $region44
      $region43: #{tpu_custom_call.1} parent=5 // pred_region
        %s419 = ssub.s32 %s12, 2
        // Predicated region
        $region45: #{tpu_custom_call.1} parent=43 // pred_check
          %p420 = pneg %p88
        $region46: #{tpu_custom_call.1} parent=43 // pred_check_branch
          %422 = sbr.rel (%p420) target = $region48
        $region47: #{tpu_custom_call.1} parent=43 // pred_region
          %p423 = scmp.lt.s32.totalorder %s18, 1
          %s424 = scalar_select %p423, %s18, 1
          %s425 = smul.addr %s424, 2
          %s426 = smul.addr %s425, 8
          %s427 = scalar_lea.vmem %s2, %s426
        $region48: #{tpu_custom_call.1} parent=43 // pred_fallthru
          _
      $region44: #{tpu_custom_call.1} parent=5 // pred_fallthru
        _
    $region6: #{tpu_custom_call.1} parent=1 // loop_footer
      %s16 = sadd.s32 1, %s12
    $region7: #{tpu_custom_call.1} parent=1 // loop_footer_branch
      %11 = sbr.rel target = $region3
    $region8: #{tpu_custom_call.1} parent=1 // loop_exit
      _
    %428 = vsyncpa [#allocation3], 1
    %s429 = scalar_lea.sflag [#allocation3], 1
    %430 = vsyncpa %s429, 1
    %431 = vsyncpa [#allocation5], 1

</llo_original>
